<compile_context>
chip_gen: v5e
topology: v5e:2x2
jax: 0.10.0
libtpu: 0.0.40
codegen_flags: <defaults>
</compile_context>

<pallas_src>
import functools

import jax
import jax.numpy as jnp
from jax.experimental import pallas as pl
from jax.experimental.pallas import tpu as pltpu


def _nnpack_kernel(b_ref, xs_ref, ys_ref, out_ref, sw_ref, sv_ref, *, eps, approx):
    # b_ref  : (1, tile_d)       query block (row 0 of b)
    # xs_ref : (tile_n, tile_d)  sample x's for this n-tile
    # ys_ref : (tile_n, tile_d)  sample y's for this n-tile
    # out_ref: (1, tile_d)
    # sw_ref, sv_ref: (1, tile_d) f32 accumulators, resident across the n axis.
    k = pl.program_id(1)

    @pl.when(k == 0)
    def _():
        sw_ref[...] = jnp.zeros_like(sw_ref)
        sv_ref[...] = jnp.zeros_like(sv_ref)

    x = b_ref[...].astype(jnp.float32)     # (1, tile_d)
    xs = xs_ref[...].astype(jnp.float32)   # (tile_n, tile_d)
    ys = ys_ref[...].astype(jnp.float32)   # (tile_n, tile_d)

    d = x - xs                              # broadcast query over the samples
    # clamp(min=eps) == maximum(., eps); reciprocal lands on the EUP slot.
    w = pl.reciprocal(jnp.maximum(d * d, eps), approx=approx)

    sw_ref[...] += jnp.sum(w, axis=0, keepdims=True)
    sv_ref[...] += jnp.sum(w * ys, axis=0, keepdims=True)

    @pl.when(k == pl.num_programs(1) - 1)
    def _():
        out_ref[...] = (
            sv_ref[...] * pl.reciprocal(sw_ref[...], approx=approx)
        ).astype(out_ref.dtype)


def _vmem_budget_bytes():
    """Generation-aware VMEM budget for tile selection (+ physical capacity)."""
    try:
        cap = pltpu.get_tpu_info().vmem_capacity_bytes
    except Exception:  # pragma: no cover - conservative fallback
        cap = 64 << 20
    # ~35% of physical for pipeline buffers leaves headroom for the compiler:
    # ~44 MiB on v5e/v6e (128 MiB), ~22 MiB on v7x (64 MiB).
    return max(8 << 20, int(cap * 0.35)), cap


def _footprint_bytes(tile_n, tile_d, itemsize):
    xs_ys = 2 * 2 * tile_n * tile_d * itemsize   # xs, ys: 2 arrays x 2 buffers
    b_out = 2 * 2 * 1 * tile_d * itemsize        # b + out blocks, double-buffered
    scratch = 2 * 1 * tile_d * 4                 # sw, sv f32 accumulators
    return xs_ys + b_out + scratch


def _select_tiles(n, D, itemsize=4, max_lane_tile=8192):
    """Pick (tile_n, tile_d, vmem_limit_bytes) that fit the per-chip VMEM budget."""
    assert D % 128 == 0, "feature dim must be a multiple of 128"
    budget, vmem_cap = _vmem_budget_bytes()

    # tile_n must divide n and be a multiple of 8 (or equal n) to stay on the
    # unmasked (8,128)-tiling path.  Prefer the whole n when it fits.
    tile_n_candidates = [n] + sorted(
        (d for d in range(8, n, 8) if n % d == 0), reverse=True)
    tile_n = n
    for tn in tile_n_candidates:
        if _footprint_bytes(tn, 128, itemsize) <= budget:
            tile_n = tn
            break

    # tile_d: largest lane-dense divisor of D (<= max_lane_tile) fitting budget.
    tile_d = 128
    for td in range(128, min(D, max_lane_tile) + 1, 128):
        if D % td == 0 and _footprint_bytes(tile_n, td, itemsize) <= budget:
            tile_d = max(tile_d, td)

    # Optional megacore (v7x) split: only worth an extra pipeline step when the
    # per-TC DMA time is large; pure loss on single-TC chips / tiny problems.
    total_input_bytes = 2 * n * D * itemsize
    if D // tile_d < 2 and total_input_bytes >= (4 << 20) and (D // 2) % 128 == 0:
        tile_d = D // 2

    vmem_limit = int(min(
        max(_footprint_bytes(tile_n, tile_d, itemsize) + (2 << 20), 32 << 20),
        0.9 * vmem_cap,
    ))
    return tile_n, tile_d, vmem_limit


def nnpack_forward(b, xs, ys, eps=1e-5, approx=False):
    """JAX/Pallas equivalent of NNPack.forward(b).

    b : (B, D) — only b[0] is used (matches the PyTorch module).
    xs: (n, D) — stored sample inputs.
    ys: (n, D) — stored sample targets.
    Returns (D,).
    """
    n, D = xs.shape
    B, Db = b.shape
    assert Db == D and ys.shape == (n, D)

    itemsize = jnp.dtype(xs.dtype).itemsize
    tile_n, tile_d, vmem_limit = _select_tiles(n, D, itemsize=itemsize)
    assert D % tile_d == 0 and n % tile_n == 0

    # Pre-slice the query so the b BlockSpec's sublane dim equals the full dim.
    b_q = b[:1]

    cost = pl.CostEstimate(
        flops=6 * n * D,                         # sub, sq, max, w*ys, 2 accumulates
        transcendentals=(n + 1) * D,             # n reciprocals + final reciprocal
        bytes_accessed=itemsize * (2 * n * D + 2 * D),
    )

    out = pl.pallas_call(
        functools.partial(_nnpack_kernel, eps=eps, approx=approx),
        out_shape=jax.ShapeDtypeStruct((1, D), xs.dtype),
        grid_spec=pltpu.PrefetchScalarGridSpec(
            num_scalar_prefetch=0,
            grid=(D // tile_d, n // tile_n),       # (lane tiles, n tiles)
            in_specs=[
                pl.BlockSpec((1, tile_d), lambda j, k: (0, j)),        # query
                pl.BlockSpec((tile_n, tile_d), lambda j, k: (k, j)),   # xs
                pl.BlockSpec((tile_n, tile_d), lambda j, k: (k, j)),   # ys
            ],
            out_specs=pl.BlockSpec((1, tile_d), lambda j, k: (0, j)),
            scratch_shapes=[
                pltpu.VMEM((1, tile_d), jnp.float32),  # sum of weights
                pltpu.VMEM((1, tile_d), jnp.float32),  # sum of weighted ys
            ],
        ),
        compiler_params=pltpu.CompilerParams(
            dimension_semantics=("parallel", "arbitrary"),
            vmem_limit_bytes=vmem_limit,
        ),
        cost_estimate=cost,
    )(b_q, xs, ys)
    return out[0]


def _reference(b, xs, ys, eps=1e-5):
    x = b[0].astype(jnp.float32)
    d = x[None, :] - xs.astype(jnp.float32)
    w = 1.0 / jnp.maximum(d * d, eps)
    return (jnp.sum(w * ys.astype(jnp.float32), axis=0) / jnp.sum(w, axis=0)).astype(xs.dtype)


if __name__ == "__main__":
    key = jax.random.PRNGKey(0)

    # --- small shapes consistent with the module: n=8 samples, D=128, B=2 ---
    n, D, B = 8, 128, 2
    k_samples, k_b, k2_samples, k2_b = jax.random.split(key, 4)

    # samples[i][0] -> xs[i]; samples[i][1:] (squeezed) -> ys[i]
    samples = jax.random.normal(k_samples, (n, 2, D), dtype=jnp.float32)
    xs = samples[:, 0, :]
    ys = samples[:, 1, :]
    b = jax.random.normal(k_b, (B, D), dtype=jnp.float32)

    out = jax.block_until_ready(nnpack_forward(b, xs, ys, eps=1e-5))
    ref = _reference(b, xs, ys, eps=1e-5)
    assert out.shape == (D,)
    assert jnp.allclose(out, ref, rtol=1e-5, atol=1e-5)

    # --- second check: wider feature dim exercises the multi-tile lane path ---
    D2 = 1024
    samples2 = jax.random.normal(k2_samples, (n, 2, D2), dtype=jnp.float32)
    xs2 = samples2[:, 0, :]
    ys2 = samples2[:, 1, :]
    b2 = jax.random.normal(k2_b, (B, D2), dtype=jnp.float32)

    out2 = jax.block_until_ready(nnpack_forward(b2, xs2, ys2, eps=1e-5))
    ref2 = _reference(b2, xs2, ys2, eps=1e-5)
    assert out2.shape == (D2,)
    assert jnp.allclose(out2, ref2, rtol=1e-5, atol=1e-5)

    print("KERNEL_OK")
</pallas_src>

<mosaic_0001>
module attributes {stable_mosaic.version = 11 : i64} {
  func.func @_nnpack_kernel(%arg0: i32, %arg1: i32, %arg2: memref<1x128xf32, #tpu.memory_space<vmem>>, %arg3: memref<8x128xf32, #tpu.memory_space<vmem>>, %arg4: memref<8x128xf32, #tpu.memory_space<vmem>>, %arg5: memref<1x128xf32, #tpu.memory_space<vmem>>, %arg6: memref<1x128xf32, #tpu.memory_space<vmem>>, %arg7: memref<1x128xf32, #tpu.memory_space<vmem>>) attributes {dimension_semantics = [#tpu.dimension_semantics<parallel>, #tpu.dimension_semantics<arbitrary>], iteration_bounds = array<i64: 1, 1>, scalar_prefetch = 0 : i64, scratch_operands = 2 : i64, tpu.core_type = #tpu.core_type<tc>, window_params = [{transform_indices = @transform_0, window_bounds = array<i64: 1, 128>}, {transform_indices = @transform_1, window_bounds = array<i64: 8, 128>}, {transform_indices = @transform_2, window_bounds = array<i64: 8, 128>}, {transform_indices = @transform_3, window_bounds = array<i64: 1, 128>}]} {
    %c0_i32 = arith.constant 0 : i32
    %0 = arith.cmpi eq, %arg1, %c0_i32 : i32
    %1 = arith.extui %0 : i1 to i32
    %c0_i32_0 = arith.constant 0 : i32
    %2 = arith.cmpi ne, %1, %c0_i32_0 : i32
    scf.if %2 {
      %cst_18 = arith.constant 0.000000e+00 : f32
      %26 = vector.broadcast %cst_18 : f32 to vector<1x128xf32>
      %c0_19 = arith.constant 0 : index
      %c0_20 = arith.constant 0 : index
      %27 = vector.load %arg6[%c0_19, %c0_20] : memref<1x128xf32, #tpu.memory_space<vmem>>, vector<1x128xf32>
      tpu.vector_store %arg6[%c0_19, %c0_20], %26 {strides = array<i32>} : memref<1x128xf32, #tpu.memory_space<vmem>>, vector<1x128xf32>,
      %cst_21 = arith.constant 0.000000e+00 : f32
      %28 = vector.broadcast %cst_21 : f32 to vector<1x128xf32>
      %c0_22 = arith.constant 0 : index
      %c0_23 = arith.constant 0 : index
      %29 = vector.load %arg7[%c0_22, %c0_23] : memref<1x128xf32, #tpu.memory_space<vmem>>, vector<1x128xf32>
      tpu.vector_store %arg7[%c0_22, %c0_23], %28 {strides = array<i32>} : memref<1x128xf32, #tpu.memory_space<vmem>>, vector<1x128xf32>,
    } else {
    }
    %c0 = arith.constant 0 : index
    %c0_1 = arith.constant 0 : index
    %3 = vector.load %arg2[%c0, %c0_1] : memref<1x128xf32, #tpu.memory_space<vmem>>, vector<1x128xf32>
    %c0_2 = arith.constant 0 : index
    %c0_3 = arith.constant 0 : index
    %4 = vector.load %arg3[%c0_2, %c0_3] : memref<8x128xf32, #tpu.memory_space<vmem>>, vector<8x128xf32>
    %c0_4 = arith.constant 0 : index
    %c0_5 = arith.constant 0 : index
    %5 = vector.load %arg4[%c0_4, %c0_5] : memref<8x128xf32, #tpu.memory_space<vmem>>, vector<8x128xf32>
    %6 = vector.broadcast %3 : vector<1x128xf32> to vector<8x128xf32>
    %7 = arith.subf %6, %4 : vector<8x128xf32>
    %8 = arith.mulf %7, %7 : vector<8x128xf32>
    %cst = arith.constant 9.99999974E-6 : f32
    %9 = vector.broadcast %cst : f32 to vector<8x128xf32>
    %10 = arith.maximumf %8, %9 : vector<8x128xf32>
    %11 = tpu.reciprocal %10 : vector<8x128xf32> -> vector<8x128xf32>
    %c0_6 = arith.constant 0 : index
    %c0_7 = arith.constant 0 : index
    %12 = vector.load %arg6[%c0_6, %c0_7] : memref<1x128xf32, #tpu.memory_space<vmem>>, vector<1x128xf32>
    %cst_8 = arith.constant dense<0.000000e+00> : vector<128xf32>
    %13 = vector.multi_reduction <add>, %11, %cst_8 [0] : vector<8x128xf32> to vector<128xf32>
    %14 = vector.shape_cast %13 : vector<128xf32> to vector<1x128xf32>
    %15 = arith.addf %12, %14 : vector<1x128xf32>
    %c0_9 = arith.constant 0 : index
    %c0_10 = arith.constant 0 : index
    %16 = vector.load %arg6[%c0_9, %c0_10] : memref<1x128xf32, #tpu.memory_space<vmem>>, vector<1x128xf32>
    tpu.vector_store %arg6[%c0_9, %c0_10], %15 {strides = array<i32>} : memref<1x128xf32, #tpu.memory_space<vmem>>, vector<1x128xf32>,
    %c0_11 = arith.constant 0 : index
    %c0_12 = arith.constant 0 : index
    %17 = vector.load %arg7[%c0_11, %c0_12] : memref<1x128xf32, #tpu.memory_space<vmem>>, vector<1x128xf32>
    %18 = arith.mulf %11, %5 : vector<8x128xf32>
    %cst_13 = arith.constant dense<0.000000e+00> : vector<128xf32>
    %19 = vector.multi_reduction <add>, %18, %cst_13 [0] : vector<8x128xf32> to vector<128xf32>
    %20 = vector.shape_cast %19 : vector<128xf32> to vector<1x128xf32>
    %21 = arith.addf %17, %20 : vector<1x128xf32>
    %c0_14 = arith.constant 0 : index
    %c0_15 = arith.constant 0 : index
    %22 = vector.load %arg7[%c0_14, %c0_15] : memref<1x128xf32, #tpu.memory_space<vmem>>, vector<1x128xf32>
    tpu.vector_store %arg7[%c0_14, %c0_15], %21 {strides = array<i32>} : memref<1x128xf32, #tpu.memory_space<vmem>>, vector<1x128xf32>,
    %c0_i32_16 = arith.constant 0 : i32
    %23 = arith.cmpi eq, %arg1, %c0_i32_16 : i32
    %24 = arith.extui %23 : i1 to i32
    %c0_i32_17 = arith.constant 0 : i32
    %25 = arith.cmpi ne, %24, %c0_i32_17 : i32
    scf.if %25 {
      %c0_18 = arith.constant 0 : index
      %c0_19 = arith.constant 0 : index
      %26 = vector.load %arg7[%c0_18, %c0_19] : memref<1x128xf32, #tpu.memory_space<vmem>>, vector<1x128xf32>
      %c0_20 = arith.constant 0 : index
      %c0_21 = arith.constant 0 : index
      %27 = vector.load %arg6[%c0_20, %c0_21] : memref<1x128xf32, #tpu.memory_space<vmem>>, vector<1x128xf32>
      %28 = tpu.reciprocal %27 : vector<1x128xf32> -> vector<1x128xf32>
      %29 = arith.mulf %26, %28 : vector<1x128xf32>
      %c0_22 = arith.constant 0 : index
      %c0_23 = arith.constant 0 : index
      %30 = vector.load %arg5[%c0_22, %c0_23] : memref<1x128xf32, #tpu.memory_space<vmem>>, vector<1x128xf32>
      tpu.vector_store %arg5[%c0_22, %c0_23], %29 {strides = array<i32>} : memref<1x128xf32, #tpu.memory_space<vmem>>, vector<1x128xf32>,
    } else {
    }
    return
  }
  func.func @transform_0(%arg0: i32, %arg1: i32) -> (i32, i32) {
    %c0_i32 = arith.constant 0 : i32
    %c0_i32_0 = arith.constant 0 : i32
    return %c0_i32, %arg0 : i32, i32
  }
  func.func @transform_1(%arg0: i32, %arg1: i32) -> (i32, i32) {
    %c0_i32 = arith.constant 0 : i32
    return %arg1, %arg0 : i32, i32
  }
  func.func @transform_2(%arg0: i32, %arg1: i32) -> (i32, i32) {
    %c0_i32 = arith.constant 0 : i32
    return %arg1, %arg0 : i32, i32
  }
  func.func @transform_3(%arg0: i32, %arg1: i32) -> (i32, i32) {
    %c0_i32 = arith.constant 0 : i32
    %c0_i32_0 = arith.constant 0 : i32
    return %c0_i32, %arg0 : i32, i32
  }
}

</mosaic_0001>

<llo_original>
// kernel: tpu_custom_call.1
$region0: #{tpu_custom_call.1}
  #allocation0 [shape = 'u32[]', space=smem, size = 0x4, offset = 0x4, fixed_abs, tag = 'smem constant byte address 0x4 - core index']
  #allocation1 [shape = 'u32[72,128]{1,0:T(1,128)}', space=vmem, size = 0x9000, scoped, tag = 'internal scratch']
  #allocation2 [shape = 'f32[1,128]{1,0:T(1,128)}', space=vmem, size = 0x200, scoped, tag = 'scratch operand']
  #allocation3 [shape = 'f32[1,128]{1,0:T(1,128)}', space=vmem, size = 0x200, scoped, tag = 'scratch operand']
  %s0 = inlined_call_operand.hbm [shape: f32[1,128], index: 0, kind: input, shape index: {}]
  %s1 = inlined_call_operand.hbm [shape: f32[8,128], index: 1, kind: input, shape index: {}]
  %s2 = inlined_call_operand.hbm [shape: f32[8,128], index: 2, kind: input, shape index: {}]
  %s3 = inlined_call_operand.hbm [shape: f32[1,128], index: 3, kind: output, shape index: {}]
  %s4 = sld [smem:[#allocation0]]
  $region42: #{tpu_custom_call.1} parent=0
    _
  %s6 = ssub.s32 1, %s4
  %s7 = scalar_select 0, %s6, %s4
  $region1: #{tpu_custom_call.1} parent=0
    #allocation4 [shape = 'u8[512]{0}', space=vmem, size = 0x400, scoped, tag = 'input window, operand 0, single buffered']
    #allocation5 [shape = 's32[1]{0}', space=sflag, size = 0x4, scoped, tag = 'scoped memory for tpu_custom_call.1']
    #allocation6 [shape = 's32[1]{0}', space=sflag, size = 0x4, scoped, tag = 'scoped memory for tpu_custom_call.1']
    #allocation7 [shape = 'u8[4096]{0}', space=vmem, size = 0x1000, scoped, tag = 'input window, operand 1, single buffered']
    #allocation8 [shape = 's32[1]{0}', space=sflag, size = 0x4, scoped, tag = 'scoped memory for tpu_custom_call.1']
    #allocation9 [shape = 'u8[4096]{0}', space=vmem, size = 0x1000, scoped, tag = 'input window, operand 2, single buffered']
    #allocation10 [shape = 'u8[512]{0}', space=vmem, size = 0x400, scoped, tag = 'output window, operand 0, single buffered']
    %8 = vsyncpa [#allocation5], 0
    %9 = vsyncpa [#allocation8], 0
    %10 = vsyncpa [#allocation6], 0
    // Predicated region
    $region2: #{tpu_custom_call.1} parent=1 // pred_check
      _
    $region3: #{tpu_custom_call.1} parent=1 // pred_check_branch
      %12 = sbr.rel (0) target = $region5
    $region4: #{tpu_custom_call.1} parent=1 // pred_region
      %14 = vsyncadd [#allocation5], 0
      %s16 = sshll.u32 %s0, 4
      %s17 = int_to_ptr.hbm [resolvable:$true] %s16
      %s18 = sshll.u32 [#allocation4], 4
      %s19 = int_to_ptr.vmem [resolvable:$true] %s18
      %21 = dma.hbm_to_vmem [thread:$0]  %s17, 16, %s19, [#allocation5]
    $region5: #{tpu_custom_call.1} parent=1 // pred_fallthru
      _
    // Predicated region
    $region6: #{tpu_custom_call.1} parent=1 // pred_check
      _
    $region7: #{tpu_custom_call.1} parent=1 // pred_check_branch
      %23 = sbr.rel (0) target = $region9
    $region8: #{tpu_custom_call.1} parent=1 // pred_region
      %25 = vsyncadd [#allocation8], 0
      %s27 = sshll.u32 %s1, 4
      %s28 = int_to_ptr.hbm [resolvable:$true] %s27
      %s29 = sshll.u32 [#allocation7], 4
      %s30 = int_to_ptr.vmem [resolvable:$true] %s29
      %32 = dma.hbm_to_vmem [thread:$0]  %s28, 128, %s30, [#allocation8]
    $region9: #{tpu_custom_call.1} parent=1 // pred_fallthru
      _
    // Predicated region
    $region10: #{tpu_custom_call.1} parent=1 // pred_check
      _
    $region11: #{tpu_custom_call.1} parent=1 // pred_check_branch
      %34 = sbr.rel (0) target = $region13
    $region12: #{tpu_custom_call.1} parent=1 // pred_region
      %36 = vsyncadd [#allocation8], 0
      %s38 = sshll.u32 %s2, 4
      %s39 = int_to_ptr.hbm [resolvable:$true] %s38
      %s40 = sshll.u32 [#allocation9], 4
      %s41 = int_to_ptr.vmem [resolvable:$true] %s40
      %43 = dma.hbm_to_vmem [thread:$0]  %s39, 128, %s41, [#allocation8]
    $region13: #{tpu_custom_call.1} parent=1 // pred_fallthru
      _
    // Predicated region
    $region14: #{tpu_custom_call.1} parent=1 // pred_check
      _
    $region15: #{tpu_custom_call.1} parent=1 // pred_check_branch
      %45 = sbr.rel (0) target = $region17
    $region16: #{tpu_custom_call.1} parent=1 // pred_region
      %47 = dma.done [#allocation5], 16
    $region17: #{tpu_custom_call.1} parent=1 // pred_fallthru
      _
    // Predicated region
    $region18: #{tpu_custom_call.1} parent=1 // pred_check
      _
    $region19: #{tpu_custom_call.1} parent=1 // pred_check_branch
      %49 = sbr.rel (0) target = $region21
    $region20: #{tpu_custom_call.1} parent=1 // pred_region
      %51 = dma.done [#allocation8], 128
    $region21: #{tpu_custom_call.1} parent=1 // pred_fallthru
      _
    // Predicated region
    $region22: #{tpu_custom_call.1} parent=1 // pred_check
      _
    $region23: #{tpu_custom_call.1} parent=1 // pred_check_branch
      %53 = sbr.rel (0) target = $region25
    $region24: #{tpu_custom_call.1} parent=1 // pred_region
      %55 = dma.done [#allocation8], 128
    $region25: #{tpu_custom_call.1} parent=1 // pred_fallthru
      _
    %p56 = scmp.eq.s32.totalorder 0, 0
    // Predicated region
    $region26: #{tpu_custom_call.1} parent=1 // pred_check
      %p57 = pneg %p56
    $region27: #{tpu_custom_call.1} parent=1 // pred_check_branch
      %59 = sbr.rel (%p57) target = $region29
    $region28: #{tpu_custom_call.1} parent=1 // pred_region
      %60 = vst [vmem:[#allocation2] sm:$0x1] 0.0
      %61 = vst [vmem:[#allocation3] sm:$0x1] 0.0
    $region29: #{tpu_custom_call.1} parent=1 // pred_fallthru
      _
    %v62 = vld [vmem:[#allocation4] sm:$0x1]
    %v63 = vld [vmem:[#allocation7] sm:$0xff]
    %v64 = vld [vmem:[#allocation9] sm:$0xff]
    %v66 = vperm.slane %v62, 0
    %v68 = vsub.f32 %v66, %v63
    %v69 = vmul.f32 %v68, %v68
    %v70 = vmax.f32 %v69, 1e-05
    %v71 = vrcp.pop %v70
    %v72 = vmul.f32 %v70, %v71
    %v73 = vsub.f32 1.0, %v72
    %v74 = vmul.f32 %v71, %v73
    %v75 = vadd.f32 %v71, %v74
    %vm76 = vweird.f32 %v70
    %vm77 = vweird.f32 %v71
    %vm78 = vmor %vm76, %vm77
    %v79 = vsel %vm78, %v71, %v75
    %v80 = vand.u32 2147483647, %v70
    %vm81 = vcmp.eq.f32.partialorder %v80, 8.507059e+37
    %v82 = vand.u32 %v70, 2147483648
    %v83 = vor.u32 1.1754944e-38, %v82
    %v84 = vsel %vm81, %v83, %v79
    %v85 = vld [vmem:[#allocation2] sm:$0x1]
    %v86 = vrot.slane %v84, 4
    %v87 = vadd.f32 %v84, %v86
    %v88 = vrot.slane %v87, 2
    %v89 = vadd.f32 %v87, %v88
    %v90 = vrot.slane %v89, 1
    %v91 = vadd.f32 %v89, %v90
    %v92 = vadd.f32 %v85, %v91
    %93 = vst [vmem:[#allocation2] sm:$0x1] %v92
    %v94 = vld [vmem:[#allocation3] sm:$0x1]
    %v95 = vmul.f32 %v84, %v64
    %v96 = vrot.slane %v95, 4
    %v97 = vadd.f32 %v95, %v96
    %v98 = vrot.slane %v97, 2
    %v99 = vadd.f32 %v97, %v98
    %v100 = vrot.slane %v99, 1
    %v101 = vadd.f32 %v99, %v100
    %v102 = vadd.f32 %v94, %v101
    %103 = vst [vmem:[#allocation3] sm:$0x1] %v102
    // Predicated region
    $region30: #{tpu_custom_call.1} parent=1 // pred_check
      %p104 = pneg %p56
    $region31: #{tpu_custom_call.1} parent=1 // pred_check_branch
      %106 = sbr.rel (%p104) target = $region33
    $region32: #{tpu_custom_call.1} parent=1 // pred_region
      %v107 = vld [vmem:[#allocation3] sm:$0x1]
      %v108 = vld [vmem:[#allocation2] sm:$0x1]
      %v109 = vrcp.pop %v108
      %v110 = vmul.f32 %v108, %v109
      %v111 = vsub.f32 1.0, %v110
      %v112 = vmul.f32 %v109, %v111
      %v113 = vadd.f32 %v109, %v112
      %vm114 = vweird.f32 %v108
      %vm115 = vweird.f32 %v109
      %vm116 = vmor %vm114, %vm115
      %v117 = vsel %vm116, %v109, %v113
      %v118 = vand.u32 2147483647, %v108
      %vm119 = vcmp.eq.f32.partialorder %v118, 8.507059e+37
      %v120 = vand.u32 %v108, 2147483648
      %v121 = vor.u32 1.1754944e-38, %v120
      %v122 = vsel %vm119, %v121, %v117
      %v123 = vmul.f32 %v107, %v122
      %124 = vst [vmem:[#allocation10] sm:$0x1] %v123
    $region33: #{tpu_custom_call.1} parent=1 // pred_fallthru
      _
    // Predicated region
    $region34: #{tpu_custom_call.1} parent=1 // pred_check
      _
    $region35: #{tpu_custom_call.1} parent=1 // pred_check_branch
      %126 = sbr.rel (0) target = $region37
    $region36: #{tpu_custom_call.1} parent=1 // pred_region
      %128 = vsyncadd [#allocation6], 0
      %s130 = sshll.u32 [#allocation10], 4
      %s131 = int_to_ptr.vmem [resolvable:$true] %s130
      %s132 = sshll.u32 %s3, 4
      %s133 = int_to_ptr.hbm [resolvable:$true] %s132
      %135 = dma.vmem_to_hbm [thread:$0]  %s131, 16, %s133, [#allocation6]
    $region37: #{tpu_custom_call.1} parent=1 // pred_fallthru
      _
    // Predicated region
    $region38: #{tpu_custom_call.1} parent=1 // pred_check
      _
    $region39: #{tpu_custom_call.1} parent=1 // pred_check_branch
      %137 = sbr.rel (0) target = $region41
    $region40: #{tpu_custom_call.1} parent=1 // pred_region
      %139 = dma.done [#allocation6], 16
    $region41: #{tpu_custom_call.1} parent=1 // pred_fallthru
      _
    %140 = vsyncpa [#allocation5], 1
    %141 = vsyncpa [#allocation8], 1
    %142 = vsyncpa [#allocation6], 1

</llo_original>
